<compile_context>
chip_gen: v6e
topology: v6e:2x2x1
jax: 0.10.0
libtpu: 0.0.40
codegen_flags: <defaults>
</compile_context>

<pallas_src>
import functools
import math

import jax
import jax.numpy as jnp
import numpy as np
from jax import lax
from jax.experimental import pallas as pl
from jax.experimental.pallas import tpu as pltpu


# ----------------------------------------------------------------------------
# Tiled linear:  y = x @ W^T + b   (torch weight layout (N, K)).
# M tiled on a parallel grid; W (bf16) and b stay resident in VMEM.
# ----------------------------------------------------------------------------
def _linear_kernel(x_ref, w_ref, b_ref, o_ref):
    xb = x_ref[...].astype(jnp.bfloat16)                     # bf16 MXU operands
    acc = lax.dot_general(
        xb, w_ref[...],
        dimension_numbers=(((1,), (1,)), ((), ())),          # x @ W^T
        preferred_element_type=jnp.float32,                  # f32 accumulation
    )
    o_ref[...] = (acc + b_ref[...]).astype(o_ref.dtype)


def pallas_linear(x, weight, bias=None, *, tile_m=512):
    """x: (M, K) f32; weight: torch layout (N, K); bias: (N,) or None -> (M, N) f32."""
    M, K = x.shape
    N = weight.shape[0]
    w_bf = weight.astype(jnp.bfloat16)                       # cast once; halves weight DMA
    b = (jnp.zeros((1, N), jnp.float32) if bias is None
         else bias.reshape(1, N).astype(jnp.float32))
    tm = M if M <= tile_m else tile_m
    return pl.pallas_call(
        _linear_kernel,
        grid=(pl.cdiv(M, tm),),
        in_specs=[
            pl.BlockSpec((tm, K), lambda i: (i, 0)),         # x: tiled over M
            pl.BlockSpec((N, K), lambda i: (0, 0)),          # W: resident (bf16)
            pl.BlockSpec((1, N), lambda i: (0, 0)),          # b: resident
        ],
        out_specs=pl.BlockSpec((tm, N), lambda i: (i, 0)),
        out_shape=jax.ShapeDtypeStruct((M, N), jnp.float32),
        compiler_params=pltpu.CompilerParams(dimension_semantics=("parallel",)),
        cost_estimate=pl.CostEstimate(
            flops=2 * M * N * K,
            transcendentals=0,
            bytes_accessed=4 * (M * K + M * N + N) + 2 * N * K,
        ),
    )(x, w_bf, b)


# ----------------------------------------------------------------------------
# Fused relative-position attention kernel: grid (B, H), head-major blocks,
# strided-roll rel_shift, bf16 MXU operands, in-kernel head-averaged weights.
# ----------------------------------------------------------------------------
def _attn_kernel(q_ref, k_ref, v_ref, p_ref, pbu_ref, pbv_ref, o_ref, w_ref,
                 *, scaling, inv_heads):
    L, _ = q_ref.shape
    S = k_ref.shape[0]
    contract = (((1,), (1,)), ((), ()))

    q = q_ref[...]
    # fold 1/sqrt(d) into the small (L, d) tensors, then feed the MXU bf16
    qu = ((q + pbu_ref[...]) * scaling).astype(jnp.bfloat16)
    qv = ((q + pbv_ref[...]) * scaling).astype(jnp.bfloat16)
    kb = k_ref[...].astype(jnp.bfloat16)
    pb = p_ref[...].astype(jnp.bfloat16)

    ac = lax.dot_general(qu, kb, contract,
                         preferred_element_type=jnp.float32)          # (L, S)
    bd_full = lax.dot_general(qv, pb, contract,
                              preferred_element_type=jnp.float32)     # (L, 2L)

    # rel_shift: pos was padded at column 0, so bd[i, j] = bd_full[i, j + L - i].
    # One strided rotate (jnp.roll semantics, per-row shift = L + i) in the XLU
    # slot, then keep the first S lanes; the pad column is never selected.
    bd = pltpu.roll(bd_full, shift=L, axis=1, stride=1, stride_axis=0)[:, :S]

    scores = ac + bd
    scores = scores - jnp.max(scores, axis=-1, keepdims=True)
    e = jnp.exp(scores)
    attn = e * pl.reciprocal(jnp.sum(e, axis=-1, keepdims=True), approx=True)

    o_ref[...] = jnp.dot(attn.astype(jnp.bfloat16),
                         v_ref[...].astype(jnp.bfloat16),
                         preferred_element_type=jnp.float32).astype(o_ref.dtype)

    if w_ref is not None:
        # accumulate the head-averaged weights directly into the resident block
        @pl.when(pl.program_id(1) == 0)
        def _init():
            w_ref[...] = jnp.zeros_like(w_ref)

        w_ref[...] = w_ref[...] + attn * inv_heads


def pallas_rel_attention(q, k, v, p, pbu, pbv, scaling, num_heads,
                         need_weights=True):
    """q/k/v: (B, H, L|S, d); p: (pos_bsz, H, 2L, d); pbu/pbv: (H, 1, d)."""
    B, H, L, d = q.shape
    S = k.shape[2]
    R = p.shape[2]                     # 2L (front-padded)
    pos_bsz = p.shape[0]

    if pos_bsz == 1:
        p_map = lambda b, h: (0, h, 0, 0)
    else:
        p_map = lambda b, h: (b, h, 0, 0)

    in_specs = [
        pl.BlockSpec((None, None, L, d), lambda b, h: (b, h, 0, 0)),   # q  -> (L, d)
        pl.BlockSpec((None, None, S, d), lambda b, h: (b, h, 0, 0)),   # k  -> (S, d)
        pl.BlockSpec((None, None, S, d), lambda b, h: (b, h, 0, 0)),   # v  -> (S, d)
        pl.BlockSpec((None, None, R, d), p_map),                       # p  -> (2L, d)
        pl.BlockSpec((None, 1, d), lambda b, h: (h, 0, 0)),            # pos_bias_u
        pl.BlockSpec((None, 1, d), lambda b, h: (h, 0, 0)),            # pos_bias_v
    ]
    base = functools.partial(_attn_kernel, scaling=scaling,
                             inv_heads=1.0 / num_heads)
    flops = 2 * B * H * L * d * (S + R + S)

    if need_weights:
        kernel = base
        out_specs = [
            pl.BlockSpec((None, None, L, d), lambda b, h: (b, h, 0, 0)),
            pl.BlockSpec((None, L, S), lambda b, h: (b, 0, 0)),        # accumulator over H
        ]
        out_shape = [
            jax.ShapeDtypeStruct((B, H, L, d), jnp.float32),
            jax.ShapeDtypeStruct((B, L, S), jnp.float32),
        ]
        semantics = ("parallel", "arbitrary")    # H accumulates the averaged weights
        bytes_out = 4 * (B * H * L * d + B * L * S)
    else:
        kernel = lambda qr, kr, vr, pr, ur, vvr, orf: base(qr, kr, vr, pr, ur, vvr, orf, None)
        out_specs = pl.BlockSpec((None, None, L, d), lambda b, h: (b, h, 0, 0))
        out_shape = jax.ShapeDtypeStruct((B, H, L, d), jnp.float32)
        semantics = ("parallel", "parallel")
        bytes_out = 4 * B * H * L * d

    result = pl.pallas_call(
        kernel,
        grid=(B, H),
        in_specs=in_specs,
        out_specs=out_specs,
        out_shape=out_shape,
        compiler_params=pltpu.CompilerParams(dimension_semantics=semantics),
        cost_estimate=pl.CostEstimate(
            flops=flops,
            transcendentals=B * H * L * S,
            bytes_accessed=(4 * B * H * (L + 2 * S) * d
                            + 4 * pos_bsz * H * R * d + 8 * H * d + bytes_out),
        ),
    )(q, k, v, p, pbu, pbv)

    if need_weights:
        out, w_avg = result
        return out, w_avg
    return result, None


# ----------------------------------------------------------------------------
# Full module forward (Pallas version).
# ----------------------------------------------------------------------------
def rel_position_mha_forward(params, query, key, value, pos_emb, num_heads,
                             need_weights=True):
    L, B, E = query.shape
    S = key.shape[0]
    H = num_heads
    d = E // H
    assert d * H == E
    assert S == L, "rel_shift path requires src_len == tgt_len (self-attention)"
    scaling = float(d) ** -0.5

    Wi, bi = params["in_proj_weight"], params["in_proj_bias"]       # (3E,E),(3E,)
    Wo, bo = params["out_proj_weight"], params["out_proj_bias"]     # (E,E),(E,)
    Wp = params["linear_pos_weight"]                                # (E,E)
    pbu = params["pos_bias_u"].reshape(H, 1, d)
    pbv = params["pos_bias_v"].reshape(H, 1, d)

    # in-proj runs directly on the raw (L*B, E) rows (no batch-major transpose);
    # a single transpose per side of the attention produces the head-major layout.
    if (query is key) and (key is value):
        qkv = pallas_linear(query.reshape(L * B, E), Wi, bi)        # (L*B, 3E)
        qkv = jnp.transpose(qkv.reshape(L, B, 3, H, d), (2, 1, 3, 0, 4))
        q, k, v = qkv[0], qkv[1], qkv[2]                            # each (B, H, L, d)
    else:
        def proj_heads(x, w, b2, n):
            y = pallas_linear(x.reshape(n * B, E), w, b2)
            return jnp.transpose(y.reshape(n, B, H, d), (1, 2, 0, 3))
        q = proj_heads(query, Wi[:E], bi[:E], L)
        k = proj_heads(key, Wi[E:2 * E], bi[E:2 * E], S)
        v = proj_heads(value, Wi[2 * E:], bi[2 * E:], S)

    # positional projection (no bias); pad at the FRONT to 2L relative positions
    # (lane-dense; the zero row projects to zero and is never selected by rel_shift).
    pos_bsz, Rm1, _ = pos_emb.shape
    assert Rm1 == 2 * L - 1
    assert pos_bsz in (1, B)
    pos_pad = jnp.pad(pos_emb, ((0, 0), (1, 0), (0, 0)))            # (pos_bsz, 2L, E)
    p = pallas_linear(pos_pad.reshape(pos_bsz * 2 * L, E), Wp, None)
    p = jnp.transpose(p.reshape(pos_bsz, 2 * L, H, d), (0, 2, 1, 3))  # (pos_bsz, H, 2L, d)

    # fused attention (pos-bias adds, scaling, strided rel_shift, softmax, @v,
    # optional in-kernel head-averaged weights)
    attn_out, attn_w_avg = pallas_rel_attention(q, k, v, p, pbu, pbv, scaling, H,
                                                need_weights=need_weights)

    # out-proj on (L*B, E) rows -> result is already (L, B, E); no final transpose
    ctx = jnp.transpose(attn_out, (2, 0, 1, 3)).reshape(L * B, E)   # (L, B, H, d) rows
    out = pallas_linear(ctx, Wo, bo).reshape(L, B, E)
    return out, attn_w_avg                                          # weights: (B, L, S) or None


# ----------------------------------------------------------------------------
# Pure-JAX reference (mirrors the PyTorch math, f32) for validation.
# ----------------------------------------------------------------------------
def reference_forward(params, query, key, value, pos_emb, num_heads):
    L, B, E = query.shape
    H = num_heads
    d = E // H
    scaling = float(d) ** -0.5

    Wi, bi = params["in_proj_weight"], params["in_proj_bias"]
    Wo, bo = params["out_proj_weight"], params["out_proj_bias"]
    Wp = params["linear_pos_weight"]
    pbu, pbv = params["pos_bias_u"], params["pos_bias_v"]

    qkv = query @ Wi.T + bi
    q, k, v = jnp.split(qkv, 3, axis=-1)
    q = q.reshape(L, B, H, d)
    k = k.reshape(L, B, H, d)
    v = v.reshape(L, B, H, d)

    pos_bsz = pos_emb.shape[0]
    p = (pos_emb @ Wp.T).reshape(pos_bsz, -1, H, d).transpose(0, 2, 1, 3)

    q_bhld = q.transpose(1, 2, 0, 3)
    k_bhsd = k.transpose(1, 2, 0, 3)
    v_bhsd = v.transpose(1, 2, 0, 3)
    q_u = q_bhld + pbu[None, :, None, :]
    q_v = q_bhld + pbv[None, :, None, :]

    ac = jnp.matmul(q_u, jnp.swapaxes(k_bhsd, -1, -2))              # (B,H,L,S)
    bd = jnp.matmul(q_v, jnp.swapaxes(p, -1, -2))                   # (B,H,L,2L-1)

    idx = jnp.arange(L)[None, :] - jnp.arange(L)[:, None] + (L - 1)  # (L,L)
    bd = jnp.take_along_axis(bd, idx[None, None], axis=-1)          # rel_shift

    scores = (ac + bd) * scaling
    w = jax.nn.softmax(scores, axis=-1)
    out = jnp.matmul(w, v_bhsd)                                      # (B,H,L,d)
    out = out.transpose(2, 0, 1, 3).reshape(L, B, E)
    out = out @ Wo.T + bo
    return out, w.sum(axis=1) / H


# ----------------------------------------------------------------------------
# Deterministic parameter init (xavier_uniform, zero biases) and demo run.
# ----------------------------------------------------------------------------
def _xavier_uniform(key, shape):
    fan_out, fan_in = shape[0], shape[1]
    a = math.sqrt(6.0 / (fan_in + fan_out))
    return jax.random.uniform(key, shape, jnp.float32, -a, a)


def make_params(key, embed_dim, num_heads):
    d = embed_dim // num_heads
    k = jax.random.split(key, 5)
    return {
        "in_proj_weight": _xavier_uniform(k[0], (3 * embed_dim, embed_dim)),
        "in_proj_bias": jnp.zeros((3 * embed_dim,), jnp.float32),
        "out_proj_weight": _xavier_uniform(k[1], (embed_dim, embed_dim)),
        "out_proj_bias": jnp.zeros((embed_dim,), jnp.float32),
        "linear_pos_weight": _xavier_uniform(k[2], (embed_dim, embed_dim)),
        "pos_bias_u": _xavier_uniform(k[3], (num_heads, d)),
        "pos_bias_v": _xavier_uniform(k[4], (num_heads, d)),
    }


if __name__ == "__main__":
    # L chosen so the (L, 2L) rel-shift tile is exactly 128 lanes wide.
    embed_dim, num_heads = 128, 4
    L, B = 64, 2

    root = jax.random.PRNGKey(0)
    kp, kx, kpos = jax.random.split(root, 3)

    params = make_params(kp, embed_dim, num_heads)
    x = jax.random.normal(kx, (L, B, embed_dim), jnp.float32)          # (L, N, E)
    pos_emb = jax.random.normal(kpos, (1, 2 * L - 1, embed_dim), jnp.float32)

    out, attn_w = rel_position_mha_forward(params, x, x, x, pos_emb, num_heads,
                                           need_weights=True)
    out = jax.block_until_ready(out)
    attn_w = jax.block_until_ready(attn_w)

    # need_weights=False path (skips the (B, L, S) HBM write) must also run.
    out_nw, w_none = rel_position_mha_forward(params, x, x, x, pos_emb, num_heads,
                                              need_weights=False)
    out_nw = jax.block_until_ready(out_nw)
    assert w_none is None

    ref_out, ref_w = reference_forward(params, x, x, x, pos_emb, num_heads)
    # bf16 MXU operands -> tolerance relaxed vs. the pure-f32 reference.
    np.testing.assert_allclose(np.asarray(out), np.asarray(ref_out), rtol=5e-2, atol=2e-2)
    np.testing.assert_allclose(np.asarray(attn_w), np.asarray(ref_w), rtol=5e-2, atol=5e-3)
    np.testing.assert_allclose(np.asarray(out_nw), np.asarray(out), rtol=1e-5, atol=1e-5)

    print("KERNEL_OK")
</pallas_src>

<mosaic_0001>
module attributes {stable_mosaic.version = 11 : i64} {
  func.func @_linear_kernel(%arg0: i32, %arg1: memref<128x128xf32, #tpu.memory_space<vmem>>, %arg2: memref<384x128xbf16, #tpu.memory_space<vmem>>, %arg3: memref<1x384xf32, #tpu.memory_space<vmem>>, %arg4: memref<128x384xf32, #tpu.memory_space<vmem>>) attributes {dimension_semantics = [#tpu.dimension_semantics<parallel>], iteration_bounds = array<i64: 1>, scalar_prefetch = 0 : i64, scratch_operands = 0 : i64, tpu.core_type = #tpu.core_type<tc>, window_params = [{transform_indices = @transform_0, window_bounds = array<i64: 128, 128>}, {pipeline_mode = #tpu.pipeline_mode<synchronous>, transform_indices = @transform_1, window_bounds = array<i64: 384, 128>}, {pipeline_mode = #tpu.pipeline_mode<synchronous>, transform_indices = @transform_2, window_bounds = array<i64: 1, 384>}, {transform_indices = @transform_3, window_bounds = array<i64: 128, 384>}]} {
    %c0 = arith.constant 0 : index
    %c0_0 = arith.constant 0 : index
    %0 = vector.load %arg1[%c0, %c0_0] : memref<128x128xf32, #tpu.memory_space<vmem>>, vector<128x128xf32>
    %1 = arith.truncf %0 : vector<128x128xf32> to vector<128x128xbf16>
    %c0_1 = arith.constant 0 : index
    %c0_2 = arith.constant 0 : index
    %2 = vector.load %arg2[%c0_1, %c0_2] : memref<384x128xbf16, #tpu.memory_space<vmem>>, vector<384x128xbf16>
    %cst = arith.constant dense<0.000000e+00> : vector<128x384xf32>
    %3 = tpu.matmul %1, %2, %cst {dimension_numbers = #tpu.dot_dimension_numbers<[1], [1], [0], [0], [0, 0, 1, 0], [], []>} : vector<128x128xbf16>, vector<384x128xbf16>, vector<128x384xf32> -> vector<128x384xf32>
    %c0_3 = arith.constant 0 : index
    %c0_4 = arith.constant 0 : index
    %4 = vector.load %arg3[%c0_3, %c0_4] : memref<1x384xf32, #tpu.memory_space<vmem>>, vector<1x384xf32>
    %5 = vector.broadcast %4 : vector<1x384xf32> to vector<128x384xf32>
    %6 = arith.addf %3, %5 : vector<128x384xf32>
    %c0_5 = arith.constant 0 : index
    %c0_6 = arith.constant 0 : index
    %7 = vector.load %arg4[%c0_5, %c0_6] : memref<128x384xf32, #tpu.memory_space<vmem>>, vector<128x384xf32>
    tpu.vector_store %arg4[%c0_5, %c0_6], %6 {strides = array<i32>} : memref<128x384xf32, #tpu.memory_space<vmem>>, vector<128x384xf32>,
    return
  }
  func.func @transform_0(%arg0: i32) -> (i32, i32) {
    %c0_i32 = arith.constant 0 : i32
    %c0_i32_0 = arith.constant 0 : i32
    return %arg0, %c0_i32 : i32, i32
  }
  func.func @transform_1(%arg0: i32) -> (i32, i32) {
    %c0_i32 = arith.constant 0 : i32
    %c0_i32_0 = arith.constant 0 : i32
    %c0_i32_1 = arith.constant 0 : i32
    return %c0_i32, %c0_i32_0 : i32, i32
  }
  func.func @transform_2(%arg0: i32) -> (i32, i32) {
    %c0_i32 = arith.constant 0 : i32
    %c0_i32_0 = arith.constant 0 : i32
    %c0_i32_1 = arith.constant 0 : i32
    return %c0_i32, %c0_i32_0 : i32, i32
  }
  func.func @transform_3(%arg0: i32) -> (i32, i32) {
    %c0_i32 = arith.constant 0 : i32
    %c0_i32_0 = arith.constant 0 : i32
    return %arg0, %c0_i32 : i32, i32
  }
}

</mosaic_0001>

<llo_original>
// kernel: tpu_custom_call.1
$region0: #{tpu_custom_call.1}
  #allocation0 [shape = 'u32[]', space=smem, size = 0x4, offset = 0x4, fixed_abs, tag = 'smem constant byte address 0x4 - core index']
  #allocation1 [shape = 'u32[144,128]{1,0:T(1,128)}', space=vmem, size = 0x12000, scoped, tag = 'internal scratch']
  %s0 = inlined_call_operand.hbm [shape: f32[128,128], index: 0, kind: input, shape index: {}]
  %s1 = inlined_call_operand.hbm [shape: bf16[384,128], index: 1, kind: input, shape index: {}]
  %s2 = inlined_call_operand.vmem [shape: f32[1,384], index: 2, kind: input, shape index: {}]
  %s3 = inlined_call_operand.hbm [shape: f32[128,384], index: 3, kind: output, shape index: {}]
  %s4 = sld [smem:[#allocation0]]
  $region30: #{tpu_custom_call.1} parent=0
    _
  %s6 = ssub.s32 1, %s4
  %s7 = scalar_select 0, %s6, %s4
  $region1: #{tpu_custom_call.1} parent=0
    #allocation2 [shape = 'u8[65536]{0}', space=vmem, size = 0x10000, scoped, tag = 'input window, operand 0, single buffered']
    #allocation3 [shape = 's32[1]{0}', space=sflag, size = 0x4, scoped, tag = 'scoped memory for tpu_custom_call.1']
    #allocation4 [shape = 's32[1]{0}', space=sflag, size = 0x4, scoped, tag = 'scoped memory for tpu_custom_call.1']
    #allocation5 [shape = 'u8[98304]{0}', space=vmem, size = 0x18000, scoped, tag = 'input window, operand 1, single buffered']
    #allocation6 [shape = 's32[1]{0}', space=sflag, size = 0x4, scoped, tag = 'scoped memory for tpu_custom_call.1']
    #allocation7 [shape = 'u8[196608]{0}', space=vmem, size = 0x30000, scoped, tag = 'output window, operand 0, single buffered']
    %8 = vsyncpa [#allocation3], 0
    %9 = vsyncpa [#allocation6], 0
    %10 = vsyncpa [#allocation4], 0
    // Predicated region
    $region2: #{tpu_custom_call.1} parent=1 // pred_check
      _
    $region3: #{tpu_custom_call.1} parent=1 // pred_check_branch
      %12 = sbr.rel (0) target = $region5
    $region4: #{tpu_custom_call.1} parent=1 // pred_region
      %s14 = ssub.s32 2048, 2048
      %15 = vsyncadd [#allocation3], %s14
      %s16 = sshll.u32 [#allocation2], 4
      %s17 = int_to_ptr.vmem [resolvable:$true] %s16
      %22 = dma.hbm_to_vmem [thread:$0]  %s0, 2048, %s17, [#allocation3], 128, 128, 8
    $region5: #{tpu_custom_call.1} parent=1 // pred_fallthru
      _
    // Predicated region
    $region6: #{tpu_custom_call.1} parent=1 // pred_check
      _
    $region7: #{tpu_custom_call.1} parent=1 // pred_check_branch
      %24 = sbr.rel (0) target = $region9
    $region8: #{tpu_custom_call.1} parent=1 // pred_region
      %s26 = ssub.s32 3072, 3072
      %27 = vsyncadd [#allocation6], %s26
      %s28 = sshll.u32 [#allocation5], 4
      %s29 = int_to_ptr.vmem [resolvable:$true] %s28
      %34 = dma.hbm_to_vmem [thread:$0]  %s1, 3072, %s29, [#allocation6], 64, 64, 4
    $region9: #{tpu_custom_call.1} parent=1 // pred_fallthru
      _
    // Predicated region
    $region10: #{tpu_custom_call.1} parent=1 // pred_check
      _
    $region11: #{tpu_custom_call.1} parent=1 // pred_check_branch
      %36 = sbr.rel (0) target = $region13
    $region12: #{tpu_custom_call.1} parent=1 // pred_region
      _
    $region13: #{tpu_custom_call.1} parent=1 // pred_fallthru
      _
    // Predicated region
    $region14: #{tpu_custom_call.1} parent=1 // pred_check
      _
    $region15: #{tpu_custom_call.1} parent=1 // pred_check_branch
      %38 = sbr.rel (0) target = $region17
    $region16: #{tpu_custom_call.1} parent=1 // pred_region
      %39 = dma.done [#allocation3], 2048
    $region17: #{tpu_custom_call.1} parent=1 // pred_fallthru
      _
    // Predicated region
    $region18: #{tpu_custom_call.1} parent=1 // pred_check
      _
    $region19: #{tpu_custom_call.1} parent=1 // pred_check_branch
      %41 = sbr.rel (0) target = $region21
    $region20: #{tpu_custom_call.1} parent=1 // pred_region
      %42 = dma.done [#allocation6], 3072
    $region21: #{tpu_custom_call.1} parent=1 // pred_fallthru
      _
    %v44 = vld [vmem:[#allocation2] sm:$0xff]
    %v45 = vld [vmem:[#allocation2 + $0x8] sm:$0xff]
    %v46 = vld [vmem:[#allocation2 + $0x10] sm:$0xff]
    %v47 = vld [vmem:[#allocation2 + $0x18] sm:$0xff]
    %v48 = vld [vmem:[#allocation2 + $0x20] sm:$0xff]
    %v49 = vld [vmem:[#allocation2 + $0x28] sm:$0xff]
    %v50 = vld [vmem:[#allocation2 + $0x30] sm:$0xff]
    %v51 = vld [vmem:[#allocation2 + $0x38] sm:$0xff]
    %v52 = vld [vmem:[#allocation2 + $0x40] sm:$0xff]
    %v53 = vld [vmem:[#allocation2 + $0x48] sm:$0xff]
    %v54 = vld [vmem:[#allocation2 + $0x50] sm:$0xff]
    %v55 = vld [vmem:[#allocation2 + $0x58] sm:$0xff]
    %v56 = vld [vmem:[#allocation2 + $0x60] sm:$0xff]
    %v57 = vld [vmem:[#allocation2 + $0x68] sm:$0xff]
    %v58 = vld [vmem:[#allocation2 + $0x70] sm:$0xff]
    %v59 = vld [vmem:[#allocation2 + $0x78] sm:$0xff]
    %v60 = vpack.c.bf16 %v45, %v44
    %v61 = vpack.c.bf16 %v47, %v46
    %v62 = vpack.c.bf16 %v49, %v48
    %v63 = vpack.c.bf16 %v51, %v50
    %v64 = vpack.c.bf16 %v53, %v52
    %v65 = vpack.c.bf16 %v55, %v54
    %v66 = vpack.c.bf16 %v57, %v56
    %v67 = vpack.c.bf16 %v59, %v58
    %v68 = vld [vmem:[#allocation5] sm:$0xf]
    %v69 = vld [vmem:[#allocation5 + $0x4] sm:$0xf]
    %v70 = vld [vmem:[#allocation5 + $0x8] sm:$0xf]
    %v71 = vld [vmem:[#allocation5 + $0xc] sm:$0xf]
    %v72 = vld [vmem:[#allocation5 + $0x10] sm:$0xf]
    %v73 = vld [vmem:[#allocation5 + $0x14] sm:$0xf]
    %v74 = vld [vmem:[#allocation5 + $0x18] sm:$0xf]
    %v75 = vld [vmem:[#allocation5 + $0x1c] sm:$0xf]
    %v76 = vld [vmem:[#allocation5 + $0x20] sm:$0xf]
    %v77 = vld [vmem:[#allocation5 + $0x24] sm:$0xf]
    %v78 = vld [vmem:[#allocation5 + $0x28] sm:$0xf]
    %v79 = vld [vmem:[#allocation5 + $0x2c] sm:$0xf]
    %v80 = vld [vmem:[#allocation5 + $0x30] sm:$0xf]
    %v81 = vld [vmem:[#allocation5 + $0x34] sm:$0xf]
    %v82 = vld [vmem:[#allocation5 + $0x38] sm:$0xf]
    %v83 = vld [vmem:[#allocation5 + $0x3c] sm:$0xf]
    %v84 = vld [vmem:[#allocation5 + $0x40] sm:$0xf]
    %v85 = vld [vmem:[#allocation5 + $0x44] sm:$0xf]
    %v86 = vld [vmem:[#allocation5 + $0x48] sm:$0xf]
    %v87 = vld [vmem:[#allocation5 + $0x4c] sm:$0xf]
    %v88 = vld [vmem:[#allocation5 + $0x50] sm:$0xf]
    %v89 = vld [vmem:[#allocation5 + $0x54] sm:$0xf]
    %v90 = vld [vmem:[#allocation5 + $0x58] sm:$0xf]
    %v91 = vld [vmem:[#allocation5 + $0x5c] sm:$0xf]
    %v92 = vld [vmem:[#allocation5 + $0x60] sm:$0xf]
    %v93 = vld [vmem:[#allocation5 + $0x64] sm:$0xf]
    %v94 = vld [vmem:[#allocation5 + $0x68] sm:$0xf]
    %v95 = vld [vmem:[#allocation5 + $0x6c] sm:$0xf]
    %v96 = vld [vmem:[#allocation5 + $0x70] sm:$0xf]
    %v97 = vld [vmem:[#allocation5 + $0x74] sm:$0xf]
    %v98 = vld [vmem:[#allocation5 + $0x78] sm:$0xf]
    %v99 = vld [vmem:[#allocation5 + $0x7c] sm:$0xf]
    %v100 = vld [vmem:[#allocation5 + $0x80] sm:$0xf]
    %v101 = vld [vmem:[#allocation5 + $0x84] sm:$0xf]
    %v102 = vld [vmem:[#allocation5 + $0x88] sm:$0xf]
    %v103 = vld [vmem:[#allocation5 + $0x8c] sm:$0xf]
    %v104 = vld [vmem:[#allocation5 + $0x90] sm:$0xf]
    %v105 = vld [vmem:[#allocation5 + $0x94] sm:$0xf]
    %v106 = vld [vmem:[#allocation5 + $0x98] sm:$0xf]
    %v107 = vld [vmem:[#allocation5 + $0x9c] sm:$0xf]
    %v108 = vld [vmem:[#allocation5 + $0xa0] sm:$0xf]
    %v109 = vld [vmem:[#allocation5 + $0xa4] sm:$0xf]
    %v110 = vld [vmem:[#allocation5 + $0xa8] sm:$0xf]
    %v111 = vld [vmem:[#allocation5 + $0xac] sm:$0xf]
    %v112 = vld [vmem:[#allocation5 + $0xb0] sm:$0xf]
    %v113 = vld [vmem:[#allocation5 + $0xb4] sm:$0xf]
    %v114 = vld [vmem:[#allocation5 + $0xb8] sm:$0xf]
    %v115 = vld [vmem:[#allocation5 + $0xbc] sm:$0xf]
    %v116 = vld [vmem:[%s2] sm:$0x7]
    %v118 = vlaneseq
    %v119 = vshrl.u32 %v118, 7
    %v120 = vsub.s32 0, %v119
    %v121 = vrot.slane %v116, %v120
    %v122 = vlaneseq
    %v123 = vshrl.u32 %v122, 7
    %v124 = vsub.s32 1, %v123
    %v125 = vrot.slane %v116, %v124
    %v126 = vlaneseq
    %v127 = vshrl.u32 %v126, 7
    %v128 = vsub.s32 2, %v127
    %v129 = vrot.slane %v116, %v128
    %v181 = vunpack.c.l.b16 %v68
    %v182 = vunpack.c.l.b16 %v69
    %v183 = vunpack.c.l.b16 %v70
    %v184 = vunpack.c.l.b16 %v71
    %v185 = vunpack.c.l.b16 %v72
    %v186 = vunpack.c.l.b16 %v73
    %v187 = vunpack.c.l.b16 %v74
    %v188 = vunpack.c.l.b16 %v75
    %v189 = vunpack.c.l.b16 %v76
    %v190 = vunpack.c.l.b16 %v77
    %v191 = vunpack.c.l.b16 %v78
    %v192 = vunpack.c.l.b16 %v79
    %v193 = vunpack.c.l.b16 %v80
    %v194 = vunpack.c.l.b16 %v81
    %v195 = vunpack.c.l.b16 %v82
    %v196 = vunpack.c.l.b16 %v83
    %v197 = vunpack.c.l.b16 %v84
    %v198 = vunpack.c.l.b16 %v85
    %v199 = vunpack.c.l.b16 %v86
    %v200 = vunpack.c.l.b16 %v87
    %v201 = vunpack.c.l.b16 %v88
    %v202 = vunpack.c.l.b16 %v89
    %v203 = vunpack.c.l.b16 %v90
    %v204 = vunpack.c.l.b16 %v91
    %v205 = vunpack.c.l.b16 %v92
    %v206 = vunpack.c.l.b16 %v93
    %v207 = vunpack.c.l.b16 %v94
    %v208 = vunpack.c.l.b16 %v95
    %v209 = vunpack.c.l.b16 %v96
    %v210 = vunpack.c.l.b16 %v97
    %v211 = vunpack.c.l.b16 %v98
    %v212 = vunpack.c.l.b16 %v99
    %v213 = vunpack.c.l.b16 %v100
    %v214 = vunpack.c.l.b16 %v101
    %v215 = vunpack.c.l.b16 %v102
    %v216 = vunpack.c.l.b16 %v103
    %v217 = vunpack.c.l.b16 %v104
    %v218 = vunpack.c.l.b16 %v105
    %v219 = vunpack.c.l.b16 %v106
    %v220 = vunpack.c.l.b16 %v107
    %v221 = vunpack.c.l.b16 %v108
    %v222 = vunpack.c.l.b16 %v109
    %v223 = vunpack.c.l.b16 %v110
    %v224 = vunpack.c.l.b16 %v111
    %v225 = vunpack.c.l.b16 %v112
    %v226 = vunpack.c.l.b16 %v113
    %v227 = vunpack.c.l.b16 %v114
    %v228 = vunpack.c.l.b16 %v115
    %v229 = vpack.c.b16 %v182, %v181
    %v230 = vpack.c.b16 %v184, %v183
    %v231 = vpack.c.b16 %v186, %v185
    %v232 = vpack.c.b16 %v188, %v187
    %v233 = vpack.c.b16 %v190, %v189
    %v234 = vpack.c.b16 %v192, %v191
    %v235 = vpack.c.b16 %v194, %v193
    %v236 = vpack.c.b16 %v196, %v195
    %v237 = vpack.c.b16 %v198, %v197
    %v238 = vpack.c.b16 %v200, %v199
    %v239 = vpack.c.b16 %v202, %v201
    %v240 = vpack.c.b16 %v204, %v203
    %v241 = vpack.c.b16 %v206, %v205
    %v242 = vpack.c.b16 %v208, %v207
    %v243 = vpack.c.b16 %v210, %v209
    %v244 = vpack.c.b16 %v212, %v211
    %v245 = vpack.c.b16 %v214, %v213
    %v246 = vpack.c.b16 %v216, %v215
    %v247 = vpack.c.b16 %v218, %v217
    %v248 = vpack.c.b16 %v220, %v219
    %v249 = vpack.c.b16 %v222, %v221
    %v250 = vpack.c.b16 %v224, %v223
    %v251 = vpack.c.b16 %v226, %v225
    %v252 = vpack.c.b16 %v228, %v227
    %277 = vmatprep.subr.bf16.mxu0 0
    %278 = vmatpush1.bf16.xpose.msra.mxu0 %v236
    %279 = vmatprep.subr.bf16.mxu0 0
    %280 = vmatpush1.bf16.xpose.msra.mxu0 %v235
    %281 = vmatprep.subr.bf16.mxu0 0
    %282 = vmatpush1.bf16.xpose.msra.mxu0 %v234
    %283 = vmatprep.subr.bf16.mxu0 0
    %284 = vmatpush1.bf16.xpose.msra.mxu0 %v233
    %285 = vmatprep.subr.bf16.mxu0 0
    %286 = vmatpush1.bf16.xpose.msra.mxu0 %v232
    %287 = vmatprep.subr.bf16.mxu0 0
    %288 = vmatpush1.bf16.xpose.msra.mxu0 %v231
    %289 = vmatprep.subr.bf16.mxu0 0
    %290 = vmatpush1.bf16.xpose.msra.mxu0 %v230
    %291 = vmatprep.subr.bf16.mxu0 0
    %292 = vmatpush1.bf16.xpose.msra.mxu0 %v229
    %293 = vmatprep.subr.bf16.mxu0 0
    %294 = vmatpush2.bf16.xpose.msra.mxu0 %v244
    %295 = vmatprep.subr.bf16.mxu0 0
    %296 = vmatpush2.bf16.xpose.msra.mxu0 %v243
    %297 = vmatprep.subr.bf16.mxu0 0
    %298 = vmatpush2.bf16.xpose.msra.mxu0 %v242
    %299 = vmatprep.subr.bf16.mxu0 0
    %300 = vmatpush2.bf16.xpose.msra.mxu0 %v241
    %301 = vmatprep.subr.bf16.mxu0 0
    %302 = vmatpush2.bf16.xpose.msra.mxu0 %v240
    %303 = vmatprep.subr.bf16.mxu0 0
    %304 = vmatpush2.bf16.xpose.msra.mxu0 %v239
    %305 = vmatprep.subr.bf16.mxu0 0
    %306 = vmatpush2.bf16.xpose.msra.mxu0 %v238
    %307 = vmatprep.subr.bf16.mxu0 0
    %308 = vmatpush2.bf16.xpose.msra.mxu0 %v237
    %309 = vmatprep.mubr.bf16.mxu0 0
    %310 = vmatmul.mubr.bf16.gmra.mxu0 %v60
    %v311 = vpop.f32.mrf.mxu0
    %v312 = vadd.f32 %v121, %v311
    %v313 = vpop.f32.mrf.mxu0
    %v314 = vadd.f32 %v125, %v313
    %v315 = vpop.f32.mrf.mxu0
    %v316 = vadd.f32 %v121, %v315
    %v317 = vpop.f32.mrf.mxu0
    %v318 = vadd.f32 %v125, %v317
    %319 = vmatprep.mubr.bf16.mxu0 0
    %320 = vmatmul.mubr.bf16.gmra.mxu0 %v61
    %v321 = vpop.f32.mrf.mxu0
    %v322 = vadd.f32 %v121, %v321
    %v323 = vpop.f32.mrf.mxu0
    %v324 = vadd.f32 %v125, %v323
    %v325 = vpop.f32.mrf.mxu0
    %v326 = vadd.f32 %v121, %v325
    %v327 = vpop.f32.mrf.mxu0
    %v328 = vadd.f32 %v125, %v327
    %329 = vmatprep.mubr.bf16.mxu0 0
    %330 = vmatmul.mubr.bf16.gmra.mxu0 %v62
    %v331 = vpop.f32.mrf.mxu0
    %v332 = vadd.f32 %v121, %v331
    %v333 = vpop.f32.mrf.mxu0
    %v334 = vadd.f32 %v125, %v333
    %v335 = vpop.f32.mrf.mxu0
    %v336 = vadd.f32 %v121, %v335
    %v337 = vpop.f32.mrf.mxu0
    %v338 = vadd.f32 %v125, %v337
    %339 = vmatprep.mubr.bf16.mxu0 0
    %340 = vmatmul.mubr.bf16.gmra.mxu0 %v63
    %v341 = vpop.f32.mrf.mxu0
    %v342 = vadd.f32 %v121, %v341
    %v343 = vpop.f32.mrf.mxu0
    %v344 = vadd.f32 %v125, %v343
    %v345 = vpop.f32.mrf.mxu0
    %v346 = vadd.f32 %v121, %v345
    %v347 = vpop.f32.mrf.mxu0
    %v348 = vadd.f32 %v125, %v347
    %349 = vmatprep.mubr.bf16.mxu0 0
    %350 = vmatmul.mubr.bf16.gmra.mxu0 %v64
    %v351 = vpop.f32.mrf.mxu0
    %v352 = vadd.f32 %v121, %v351
    %v353 = vpop.f32.mrf.mxu0
    %v354 = vadd.f32 %v125, %v353
    %v355 = vpop.f32.mrf.mxu0
    %v356 = vadd.f32 %v121, %v355
    %v357 = vpop.f32.mrf.mxu0
    %v358 = vadd.f32 %v125, %v357
    %359 = vmatprep.mubr.bf16.mxu0 0
    %360 = vmatmul.mubr.bf16.gmra.mxu0 %v65
    %v361 = vpop.f32.mrf.mxu0
    %v362 = vadd.f32 %v121, %v361
    %v363 = vpop.f32.mrf.mxu0
    %v364 = vadd.f32 %v125, %v363
    %v365 = vpop.f32.mrf.mxu0
    %v366 = vadd.f32 %v121, %v365
    %v367 = vpop.f32.mrf.mxu0
    %v368 = vadd.f32 %v125, %v367
    %369 = vmatprep.mubr.bf16.mxu0 0
    %370 = vmatmul.mubr.bf16.gmra.mxu0 %v66
    %v371 = vpop.f32.mrf.mxu0
    %v372 = vadd.f32 %v121, %v371
    %v373 = vpop.f32.mrf.mxu0
    %v374 = vadd.f32 %v125, %v373
    %v375 = vpop.f32.mrf.mxu0
    %v376 = vadd.f32 %v121, %v375
    %v377 = vpop.f32.mrf.mxu0
    %v378 = vadd.f32 %v125, %v377
    %379 = vmatprep.mubr.bf16.mxu0 0
    %380 = vmatmul.mubr.bf16.gmra.mxu0 %v67
    %v381 = vpop.f32.mrf.mxu0
    %v382 = vadd.f32 %v121, %v381
    %v383 = vpop.f32.mrf.mxu0
    %v384 = vadd.f32 %v125, %v383
    %v385 = vpop.f32.mrf.mxu0
    %v386 = vadd.f32 %v121, %v385
    %v387 = vpop.f32.mrf.mxu0
    %v388 = vadd.f32 %v125, %v387
    %389 = vdwg.mxu0
    %390 = vmatprep.subr.bf16.mxu0 0
    %391 = vmatpush1.bf16.xpose.msra.mxu0 %v252
    %392 = vmatprep.subr.bf16.mxu0 0
    %393 = vmatpush1.bf16.xpose.msra.mxu0 %v251
    %394 = vmatprep.subr.bf16.mxu0 0
    %395 = vmatpush1.bf16.xpose.msra.mxu0 %v250
    %396 = vmatprep.subr.bf16.mxu0 0
    %397 = vmatpush1.bf16.xpose.msra.mxu0 %v249
    %398 = vmatprep.subr.bf16.mxu0 0
    %399 = vmatpush1.bf16.xpose.msra.mxu0 %v248
    %400 = vmatprep.subr.bf16.mxu0 0
    %401 = vmatpush1.bf16.xpose.msra.mxu0 %v247
    %402 = vmatprep.subr.bf16.mxu0 0
    %403 = vmatpush1.bf16.xpose.msra.mxu0 %v246
    %404 = vmatprep.subr.bf16.mxu0 0
    %405 = vmatpush1.bf16.xpose.msra.mxu0 %v245
    %406 = vmatprep.subr.bf16.mxu0 0
    %407 = vmatpush2.bf16.xpose.msra.mxu0 0
    %408 = vmatprep.subr.bf16.mxu0 0
    %409 = vmatpush2.bf16.xpose.msra.mxu0 0
    %410 = vmatprep.subr.bf16.mxu0 0
    %411 = vmatpush2.bf16.xpose.msra.mxu0 0
    %412 = vmatprep.subr.bf16.mxu0 0
    %413 = vmatpush2.bf16.xpose.msra.mxu0 0
    %414 = vmatprep.subr.bf16.mxu0 0
    %415 = vmatpush2.bf16.xpose.msra.mxu0 0
    %416 = vmatprep.subr.bf16.mxu0 0
    %417 = vmatpush2.bf16.xpose.msra.mxu0 0
    %418 = vmatprep.subr.bf16.mxu0 0
    %419 = vmatpush2.bf16.xpose.msra.mxu0 0
    %420 = vmatprep.subr.bf16.mxu0 0
    %421 = vmatpush2.bf16.xpose.msra.mxu0 0
    %422 = vmatprep.mubr.bf16.mxu0 0
    %423 = vmatmul.mubr.bf16.gmra.mxu0 %v60
    %v424 = vpop.f32.mrf.mxu0
    %v425 = vadd.f32 %v129, %v424
    %v426 = vpop.f32.mrf.mxu0
    %v427 = vpop.f32.mrf.mxu0
    %v428 = vadd.f32 %v129, %v427
    %v429 = vpop.f32.mrf.mxu0
    %430 = vmatprep.mubr.bf16.mxu0 0
    %431 = vmatmul.mubr.bf16.gmra.mxu0 %v61
    %v432 = vpop.f32.mrf.mxu0
    %v433 = vadd.f32 %v129, %v432
    %v434 = vpop.f32.mrf.mxu0
    %v435 = vpop.f32.mrf.mxu0
    %v436 = vadd.f32 %v129, %v435
    %v437 = vpop.f32.mrf.mxu0
    %438 = vmatprep.mubr.bf16.mxu0 0
    %439 = vmatmul.mubr.bf16.gmra.mxu0 %v62
    %v440 = vpop.f32.mrf.mxu0
    %v441 = vadd.f32 %v129, %v440
    %v442 = vpop.f32.mrf.mxu0
    %v443 = vpop.f32.mrf.mxu0
    %v444 = vadd.f32 %v129, %v443
    %v445 = vpop.f32.mrf.mxu0
    %446 = vmatprep.mubr.bf16.mxu0 0
    %447 = vmatmul.mubr.bf16.gmra.mxu0 %v63
    %v448 = vpop.f32.mrf.mxu0
    %v449 = vadd.f32 %v129, %v448
    %v450 = vpop.f32.mrf.mxu0
    %v451 = vpop.f32.mrf.mxu0
    %v452 = vadd.f32 %v129, %v451
    %v453 = vpop.f32.mrf.mxu0
    %454 = vmatprep.mubr.bf16.mxu0 0
    %455 = vmatmul.mubr.bf16.gmra.mxu0 %v64
    %v456 = vpop.f32.mrf.mxu0
    %v457 = vadd.f32 %v129, %v456
    %v458 = vpop.f32.mrf.mxu0
    %v459 = vpop.f32.mrf.mxu0
    %v460 = vadd.f32 %v129, %v459
    %v461 = vpop.f32.mrf.mxu0
    %462 = vmatprep.mubr.bf16.mxu0 0
    %463 = vmatmul.mubr.bf16.gmra.mxu0 %v65
    %v464 = vpop.f32.mrf.mxu0
    %v465 = vadd.f32 %v129, %v464
    %v466 = vpop.f32.mrf.mxu0
    %v467 = vpop.f32.mrf.mxu0
    %v468 = vadd.f32 %v129, %v467
    %v469 = vpop.f32.mrf.mxu0
    %470 = vmatprep.mubr.bf16.mxu0 0
    %471 = vmatmul.mubr.bf16.gmra.mxu0 %v66
    %v472 = vpop.f32.mrf.mxu0
    %v473 = vadd.f32 %v129, %v472
    %v474 = vpop.f32.mrf.mxu0
    %v475 = vpop.f32.mrf.mxu0
    %v476 = vadd.f32 %v129, %v475
    %v477 = vpop.f32.mrf.mxu0
    %478 = vmatprep.mubr.bf16.mxu0 0
    %479 = vmatmul.mubr.bf16.gmra.mxu0 %v67
    %v480 = vpop.f32.mrf.mxu0
    %v481 = vadd.f32 %v129, %v480
    %v482 = vpop.f32.mrf.mxu0
    %v483 = vpop.f32.mrf.mxu0
    %v484 = vadd.f32 %v129, %v483
    %v485 = vpop.f32.mrf.mxu0
    %486 = vdwg.mxu0
    %487 = vst [vmem:[#allocation7] sm:$0xff] %v312
    %488 = vst [vmem:[#allocation7 + $0x8] sm:$0xff] %v314
    %489 = vst [vmem:[#allocation7 + $0x10] sm:$0xff] %v425
    %490 = vst [vmem:[#allocation7 + $0x18] sm:$0xff] %v316
    %491 = vst [vmem:[#allocation7 + $0x20] sm:$0xff] %v318
    %492 = vst [vmem:[#allocation7 + $0x28] sm:$0xff] %v428
    %493 = vst [vmem:[#allocation7 + $0x30] sm:$0xff] %v322
    %494 = vst [vmem:[#allocation7 + $0x38] sm:$0xff] %v324
    %495 = vst [vmem:[#allocation7 + $0x40] sm:$0xff] %v433
    %496 = vst [vmem:[#allocation7 + $0x48] sm:$0xff] %v326
    %497 = vst [vmem:[#allocation7 + $0x50] sm:$0xff] %v328
    %498 = vst [vmem:[#allocation7 + $0x58] sm:$0xff] %v436
    %499 = vst [vmem:[#allocation7 + $0x60] sm:$0xff] %v332
    %500 = vst [vmem:[#allocation7 + $0x68] sm:$0xff] %v334
    %501 = vst [vmem:[#allocation7 + $0x70] sm:$0xff] %v441
    %502 = vst [vmem:[#allocation7 + $0x78] sm:$0xff] %v336
    %503 = vst [vmem:[#allocation7 + $0x80] sm:$0xff] %v338
    %504 = vst [vmem:[#allocation7 + $0x88] sm:$0xff] %v444
    %505 = vst [vmem:[#allocation7 + $0x90] sm:$0xff] %v342
    %506 = vst [vmem:[#allocation7 + $0x98] sm:$0xff] %v344
    %507 = vst [vmem:[#allocation7 + $0xa0] sm:$0xff] %v449
    %508 = vst [vmem:[#allocation7 + $0xa8] sm:$0xff] %v346
    %509 = vst [vmem:[#allocation7 + $0xb0] sm:$0xff] %v348
    %510 = vst [vmem:[#allocation7 + $0xb8] sm:$0xff] %v452
    %511 = vst [vmem:[#allocation7 + $0xc0] sm:$0xff] %v352
    %512 = vst [vmem:[#allocation7 + $0xc8] sm:$0xff] %v354
    %513 = vst [vmem:[#allocation7 + $0xd0] sm:$0xff] %v457
    %514 = vst [vmem:[#allocation7 + $0xd8] sm:$0xff] %v356
    %515 = vst [vmem:[#allocation7 + $0xe0] sm:$0xff] %v358
    %516 = vst [vmem:[#allocation7 + $0xe8] sm:$0xff] %v460
    %517 = vst [vmem:[#allocation7 + $0xf0] sm:$0xff] %v362
    %518 = vst [vmem:[#allocation7 + $0xf8] sm:$0xff] %v364
    %519 = vst [vmem:[#allocation7 + $0x100] sm:$0xff] %v465
    %520 = vst [vmem:[#allocation7 + $0x108] sm:$0xff] %v366
    %521 = vst [vmem:[#allocation7 + $0x110] sm:$0xff] %v368
    %522 = vst [vmem:[#allocation7 + $0x118] sm:$0xff] %v468
    %523 = vst [vmem:[#allocation7 + $0x120] sm:$0xff] %v372
    %524 = vst [vmem:[#allocation7 + $0x128] sm:$0xff] %v374
    %525 = vst [vmem:[#allocation7 + $0x130] sm:$0xff] %v473
    %526 = vst [vmem:[#allocation7 + $0x138] sm:$0xff] %v376
    %527 = vst [vmem:[#allocation7 + $0x140] sm:$0xff] %v378
    %528 = vst [vmem:[#allocation7 + $0x148] sm:$0xff] %v476
    %529 = vst [vmem:[#allocation7 + $0x150] sm:$0xff] %v382
    %530 = vst [vmem:[#allocation7 + $0x158] sm:$0xff] %v384
    %531 = vst [vmem:[#allocation7 + $0x160] sm:$0xff] %v481
    %532 = vst [vmem:[#allocation7 + $0x168] sm:$0xff] %v386
    %533 = vst [vmem:[#allocation7 + $0x170] sm:$0xff] %v388
    %534 = vst [vmem:[#allocation7 + $0x178] sm:$0xff] %v484
    // Predicated region
    $region22: #{tpu_custom_call.1} parent=1 // pred_check
      _
    $region23: #{tpu_custom_call.1} parent=1 // pred_check_branch
      %536 = sbr.rel (0) target = $region25
    $region24: #{tpu_custom_call.1} parent=1 // pred_region
      %s538 = ssub.s32 6144, 6144
      %539 = vsyncadd [#allocation4], %s538
      %s540 = sshll.u32 [#allocation7], 4
      %s541 = int_to_ptr.vmem [resolvable:$true] %s540
      %546 = dma.vmem_to_hbm [thread:$0]  %s541, 6144, %s3, [#allocation4], 384, 384, 24
    $region25: #{tpu_custom_call.1} parent=1 // pred_fallthru
      _
    // Predicated region
    $region26: #{tpu_custom_call.1} parent=1 // pred_check
      _
    $region27: #{tpu_custom_call.1} parent=1 // pred_check_branch
      %548 = sbr.rel (0) target = $region29
    $region28: #{tpu_custom_call.1} parent=1 // pred_region
      %549 = dma.done [#allocation4], 6144
    $region29: #{tpu_custom_call.1} parent=1 // pred_fallthru
      _
    %550 = vsyncpa [#allocation3], 1
    %551 = vsyncpa [#allocation6], 1
    %552 = vsyncpa [#allocation4], 1

</llo_original>
